<compile_context>
chip_gen: v7x
topology: tpu7x:2x2x1
jax: 0.10.0
libtpu: 0.0.40
codegen_flags: <defaults>
</compile_context>

<pallas_src>
import functools

import jax
import jax.numpy as jnp
import numpy as np
from jax import lax
from jax.experimental import pallas as pl
from jax.experimental.pallas import tpu as pltpu

LANE = 128
SUB = 8                        # f32/int32 sublane multiple
DEFAULT_ROW_TILE = 2048        # rows (of 128 lanes) per DMA block
DEFAULT_CHUNK_ROWS = 256       # rows per in-kernel compute sub-chunk

# Per-batch statistic slots in the (N, 5, 8, 128) output.
_NLL0, _NLL1, _I1, _SP1, _TB = range(5)
_NSTATS = 5


def _round_up(x, m):
    return ((x + m - 1) // m) * m


def _combined_loss_kernel(x_ref, t_ref, o_ref, *, n_vox, rt, chunk, n_chunks,
                          needs_mask):
    """x_ref: (1, 2, rt, 128); t_ref: (1, rt, 128); o_ref: (1, 5, 8, 128)."""
    v = pl.program_id(1)
    last_v = pl.num_programs(1) - 1

    @pl.when(v == 0)
    def _init_batch():
        o_ref[...] = jnp.zeros_like(o_ref)

    def fold(y):
        # (chunk, 128) -> (8, 128) partial sum: pure cross-vreg VPU adds.
        return jnp.sum(y.reshape(chunk // 8, SUB, LANE), axis=0)

    def accum_chunk(x0, x1, t, valid):
        if valid is None:
            d = x1 - x0
            w0 = 1.0 - t                       # one-hot of class 0
        else:
            # where-mask the raw loads so garbage (possibly non-finite logits)
            # in the partial trailing block / lane padding contributes nothing.
            d = jnp.where(valid, x1 - x0, 0.0)
            t = jnp.where(valid, t, 0.0)
            w0 = valid.astype(jnp.float32) - t  # masked one-hot of class 0
        # 2-class softmax / log_softmax in sigmoid / softplus form.
        e = jnp.exp(-jnp.abs(d))
        sp_pos = jnp.maximum(d, 0.0) + jnp.log(1.0 + e)   # softplus(d)  = -log p0
        sp_neg = sp_pos - d                               # softplus(-d) = -log p1
        p1 = jnp.exp(-sp_neg)                             # sigmoid(d)   = softmax class 1
        if valid is not None:
            p1 = jnp.where(valid, p1, 0.0)
        o_ref[0, _NLL0] += fold(w0 * sp_pos)   # sum_{t==0} -log p0
        o_ref[0, _NLL1] += fold(t * sp_neg)    # sum_{t==1} -log p1
        o_ref[0, _I1] += fold(p1 * t)          # dice intersection, class 1
        o_ref[0, _SP1] += fold(p1)             # sum of p1 (this batch element)
        o_ref[0, _TB] += fold(t)               # sum of target (this batch element)

    def run_tile(masked):
        def chunk_body(ci):
            r0 = ci * chunk
            if not isinstance(r0, int):
                r0 = pl.multiple_of(r0, SUB)
            x0 = x_ref[0, 0, pl.ds(r0, chunk), :].astype(jnp.float32)
            x1 = x_ref[0, 1, pl.ds(r0, chunk), :].astype(jnp.float32)
            t = t_ref[0, pl.ds(r0, chunk), :].astype(jnp.float32)
            if masked:
                row_ids = lax.broadcasted_iota(jnp.int32, (chunk, LANE), 0)
                lane_ids = lax.broadcasted_iota(jnp.int32, (chunk, LANE), 1)
                gidx = (v * rt + r0 + row_ids) * LANE + lane_ids
                valid = gidx < n_vox
            else:
                valid = None
            accum_chunk(x0, x1, t, valid)

        if n_chunks == 1:
            chunk_body(0)
        else:
            @pl.loop(0, n_chunks)
            def _(ci):
                chunk_body(ci)

    if needs_mask:
        # Only the last voxel tile can contain invalid voxels (lane padding
        # and/or the Pallas partial trailing block): pay the mask only there.
        @pl.when(v == last_v)
        def _masked_tile():
            run_tile(True)

        @pl.when(v < last_v)
        def _plain_tiles():
            run_tile(False)
    else:
        run_tile(False)


def combined_loss(logits, target, *, row_tile=DEFAULT_ROW_TILE,
                  chunk_rows=DEFAULT_CHUNK_ROWS):
    """logits: (N, 2, H, W, S); target: (N, H, W, S) with values in {0, 1}."""
    N, C, H, W, S = logits.shape
    if C != 2:
        raise NotImplementedError("kernel specializes the n_classes == 2 path")
    V = H * W * S
    smooth = 0.01

    # Lane-dense layout: pad only when V is not a multiple of 8*128 (rare);
    # otherwise the reshapes below are free (no HBM copy).
    v_pad = _round_up(V, SUB * LANE)
    rows = v_pad // LANE

    x = logits.reshape(N, C, V)                  # keep input dtype
    t = target.reshape(N, V)                     # keep native target dtype
    if v_pad != V:
        x = jnp.pad(x, ((0, 0), (0, 0), (0, v_pad - V)))
        t = jnp.pad(t, ((0, 0), (0, v_pad - V)))
    x = x.reshape(N, C, rows, LANE)
    t = t.reshape(N, rows, LANE)

    # Tiling: chunk (compute sub-chunk) divides rt (DMA block); rt <= rows so
    # only the trailing block can be partial.
    chunk = max(SUB, min(_round_up(chunk_rows, SUB), rows))
    chunk = min(chunk, max(SUB, _round_up(row_tile, SUB)))
    rt = max(chunk, min((max(row_tile, chunk) // chunk) * chunk,
                        (rows // chunk) * chunk))
    n_chunks = rt // chunk
    num_v_tiles = pl.cdiv(rows, rt)
    needs_mask = (num_v_tiles * rt * LANE != V)

    kernel = functools.partial(
        _combined_loss_kernel, n_vox=V, rt=rt, chunk=chunk,
        n_chunks=n_chunks, needs_mask=needs_mask)

    stats = pl.pallas_call(
        kernel,
        out_shape=jax.ShapeDtypeStruct((N, _NSTATS, SUB, LANE), jnp.float32),
        grid_spec=pltpu.PrefetchScalarGridSpec(
            num_scalar_prefetch=0,
            grid=(N, num_v_tiles),
            in_specs=[
                pl.BlockSpec((1, C, rt, LANE), lambda b, v: (b, 0, v, 0)),
                pl.BlockSpec((1, rt, LANE), lambda b, v: (b, v, 0)),
            ],
            out_specs=pl.BlockSpec((1, _NSTATS, SUB, LANE),
                                   lambda b, v: (b, 0, 0, 0)),
        ),
        compiler_params=pltpu.CompilerParams(
            dimension_semantics=("parallel", "arbitrary"),
            vmem_limit_bytes=48 * 1024 * 1024,
        ),
    )(x, t)

    # Tiny JAX epilogue: collapse the per-batch (8,128) partial sums and
    # combine the loss terms.
    s = jnp.sum(stats, axis=(2, 3))              # (N, 5)
    nll0 = jnp.sum(s[:, _NLL0])
    nll1 = jnp.sum(s[:, _NLL1])
    i1 = s[:, _I1]
    sp1 = s[:, _SP1]
    tb = s[:, _TB]

    vf = float(V)
    numel = float(N * V)
    n_plus = jnp.sum(tb)
    r0 = n_plus / numel                          # N_plus / (N_plus + N_minus)
    r1 = 1.0 - r0
    wbce = (r0 * nll0 + r1 * nll1) / numel

    inter1 = i1 + smooth
    union1 = sp1 + tb + smooth
    inter0 = vf - tb - sp1 + i1 + smooth         # sum((1-p1)*(1-t)) + smooth
    union0 = (vf - sp1) + (vf - tb) + smooth
    dice_score = 1.0 - jnp.sum(2.0 * inter0 / union0 + 2.0 * inter1 / union1)

    abs_sum = jnp.sum(sp1 + tb - 2.0 * i1)       # sum |p1 - t|  (== sum |p0 - oh0|)
    l1 = 2.0 * abs_sum / float(N * 2 * V)

    # Volume term: sum over both classes of (softmax - one_hot) is exactly 0.
    return wbce + l1 + 0.5 * dice_score


def reference_loss(logits, target):
    """Pure-JAX reference mirroring the PyTorch CombinedLoss (n_classes == 2)."""
    smooth = 0.01
    N, C, H, W, S = logits.shape
    V = H * W * S
    t = target.astype(jnp.int32)
    n_plus = jnp.sum(t.astype(jnp.float32))
    numel = float(t.size)
    r0 = n_plus / numel
    r1 = 1.0 - r0
    logp = jax.nn.log_softmax(logits.astype(jnp.float32), axis=1)
    oh = jax.nn.one_hot(t, C, axis=1, dtype=jnp.float32)       # (N,C,H,W,S)
    weight = jnp.where(t == 0, r0, r1)                         # (N,H,W,S)
    picked = jnp.sum(logp * oh, axis=1)
    wbce = jnp.sum(-picked * weight) / numel
    p = jax.nn.softmax(logits.astype(jnp.float32), axis=1).reshape(N, C, V)
    ohf = oh.reshape(N, C, V)
    inter = jnp.sum(p * ohf, axis=2) + smooth
    union = jnp.sum(p, axis=2) + jnp.sum(ohf, axis=2) + smooth
    dice = 1.0 - jnp.sum(2.0 * inter / union)
    l1 = jnp.mean(jnp.abs(p - ohf))
    vol = jnp.abs(jnp.sum(p - ohf)) / 2.0 / n_plus
    return wbce + l1 + 0.5 * dice + 0.5 * vol


if __name__ == "__main__":
    key = jax.random.PRNGKey(0)
    k1, k2, k3, k4, k5, k6 = jax.random.split(key, 6)
    C = 2

    # Case 1: 8^3 = 512 voxels, default tiling -> lane pad + masked single tile.
    N, H, W, S = 2, 8, 8, 8
    logits = jax.random.normal(k1, (N, C, H, W, S), dtype=jnp.float32)
    target = jax.random.randint(k2, (N, H, W, S), 0, 2, dtype=jnp.int32)
    loss = jax.block_until_ready(combined_loss(logits, target))
    ref = jax.block_until_ready(reference_loss(logits, target))
    np.testing.assert_allclose(np.asarray(loss), np.asarray(ref),
                               rtol=1e-4, atol=1e-4)

    # Case 2: 16^3 volume, row_tile=16 / chunk_rows=8 -> 2 voxel tiles, 2-chunk
    # inner loop, unmasked path everywhere (no padding / no partial block).
    N2, H2, W2, S2 = 2, 16, 16, 16
    logits2 = jax.random.normal(k3, (N2, C, H2, W2, S2), dtype=jnp.float32)
    target2 = jax.random.randint(k4, (N2, H2, W2, S2), 0, 2, dtype=jnp.int32)
    loss2 = jax.block_until_ready(
        combined_loss(logits2, target2, row_tile=16, chunk_rows=8))
    ref2 = jax.block_until_ready(reference_loss(logits2, target2))
    np.testing.assert_allclose(np.asarray(loss2), np.asarray(ref2),
                               rtol=1e-4, atol=1e-4)

    # Case 3: 24^3 volume, row_tile=48 / chunk_rows=16 -> 3 voxel tiles, the
    # last one is a partial trailing block with lane padding (masked path).
    N3, H3, W3, S3 = 2, 24, 24, 24
    logits3 = jax.random.normal(k5, (N3, C, H3, W3, S3), dtype=jnp.float32)
    target3 = jax.random.randint(k6, (N3, H3, W3, S3), 0, 2, dtype=jnp.int32)
    loss3 = jax.block_until_ready(
        combined_loss(logits3, target3, row_tile=48, chunk_rows=16))
    ref3 = jax.block_until_ready(reference_loss(logits3, target3))
    np.testing.assert_allclose(np.asarray(loss3), np.asarray(ref3),
                               rtol=1e-4, atol=1e-4)

    print("KERNEL_OK")
</pallas_src>

<mosaic_0001>
module attributes {stable_mosaic.version = 11 : i64} {
  func.func @_combined_loss_kernel(%arg0: i32, %arg1: i32, %arg2: memref<1x2x8x128xf32, #tpu.memory_space<vmem>>, %arg3: memref<1x8x128xi32, #tpu.memory_space<vmem>>, %arg4: memref<1x5x8x128xf32, #tpu.memory_space<vmem>>) attributes {dimension_semantics = [#tpu.dimension_semantics<parallel>, #tpu.dimension_semantics<arbitrary>], iteration_bounds = array<i64: 2, 1>, scalar_prefetch = 0 : i64, scratch_operands = 0 : i64, tpu.core_type = #tpu.core_type<tc>, window_params = [{transform_indices = @transform_0, window_bounds = array<i64: 1, 2, 8, 128>}, {transform_indices = @transform_1, window_bounds = array<i64: 1, 8, 128>}, {transform_indices = @transform_2, window_bounds = array<i64: 1, 5, 8, 128>}]} {
    %c0_i32 = arith.constant 0 : i32
    %0 = arith.cmpi eq, %arg1, %c0_i32 : i32
    %1 = arith.extui %0 : i1 to i32
    %c0_i32_0 = arith.constant 0 : i32
    %2 = arith.cmpi ne, %1, %c0_i32_0 : i32
    scf.if %2 {
      %cst = arith.constant 0.000000e+00 : f32
      %9 = vector.broadcast %cst : f32 to vector<1x5x8x128xf32>
      %c0 = arith.constant 0 : index
      %c0_5 = arith.constant 0 : index
      %c0_6 = arith.constant 0 : index
      %c0_7 = arith.constant 0 : index
      %10 = vector.load %arg4[%c0, %c0_5, %c0_6, %c0_7] : memref<1x5x8x128xf32, #tpu.memory_space<vmem>>, vector<1x5x8x128xf32>
      tpu.vector_store %arg4[%c0, %c0_5, %c0_6, %c0_7], %9 {strides = array<i32>} : memref<1x5x8x128xf32, #tpu.memory_space<vmem>>, vector<1x5x8x128xf32>,
    } else {
    }
    %c0_i32_1 = arith.constant 0 : i32
    %3 = arith.cmpi eq, %arg1, %c0_i32_1 : i32
    %4 = arith.extui %3 : i1 to i32
    %c0_i32_2 = arith.constant 0 : i32
    %5 = arith.cmpi ne, %4, %c0_i32_2 : i32
    scf.if %5 {
      %c0 = arith.constant 0 : index
      %c0_5 = arith.constant 0 : index
      %c0_6 = arith.constant 0 : index
      %c0_7 = arith.constant 0 : index
      %9 = vector.load %arg2[%c0, %c0_5, %c0_6, %c0_7] : memref<1x2x8x128xf32, #tpu.memory_space<vmem>>, vector<1x1x8x128xf32>
      %10 = vector.shape_cast %9 : vector<1x1x8x128xf32> to vector<8x128xf32>
      %c0_8 = arith.constant 0 : index
      %c1 = arith.constant 1 : index
      %c0_9 = arith.constant 0 : index
      %c0_10 = arith.constant 0 : index
      %11 = vector.load %arg2[%c0_8, %c1, %c0_9, %c0_10] : memref<1x2x8x128xf32, #tpu.memory_space<vmem>>, vector<1x1x8x128xf32>
      %12 = vector.shape_cast %11 : vector<1x1x8x128xf32> to vector<8x128xf32>
      %c0_11 = arith.constant 0 : index
      %c0_12 = arith.constant 0 : index
      %c0_13 = arith.constant 0 : index
      %13 = vector.load %arg3[%c0_11, %c0_12, %c0_13] : memref<1x8x128xi32, #tpu.memory_space<vmem>>, vector<1x8x128xi32>
      %14 = vector.shape_cast %13 : vector<1x8x128xi32> to vector<8x128xi32>
      %15 = arith.sitofp %14 : vector<8x128xi32> to vector<8x128xf32>
      %16 = tpu.iota {dimensions = array<i32: 0>} : vector<8x128xi32>
      %17 = tpu.iota {dimensions = array<i32: 1>} : vector<8x128xi32>
      %c8_i32 = arith.constant 8 : i32
      %18 = arith.muli %arg1, %c8_i32 : i32
      %c0_i32_14 = arith.constant 0 : i32
      %19 = arith.addi %18, %c0_i32_14 : i32
      %20 = vector.broadcast %19 : i32 to vector<8x128xi32>
      %21 = arith.addi %20, %16 : vector<8x128xi32>
      %c128_i32 = arith.constant 128 : i32
      %22 = vector.broadcast %c128_i32 : i32 to vector<8x128xi32>
      %23 = arith.muli %21, %22 : vector<8x128xi32>
      %24 = arith.addi %23, %17 : vector<8x128xi32>
      %c512_i32 = arith.constant 512 : i32
      %25 = vector.broadcast %c512_i32 : i32 to vector<8x128xi32>
      %26 = arith.cmpi slt, %24, %25 : vector<8x128xi32>
      %27 = arith.subf %12, %10 : vector<8x128xf32>
      %cst = arith.constant 0.000000e+00 : f32
      %28 = vector.broadcast %cst : f32 to vector<8x128xf32>
      %29 = arith.select %26, %27, %28 : vector<8x128xi1>, vector<8x128xf32>
      %cst_15 = arith.constant 0.000000e+00 : f32
      %30 = vector.broadcast %cst_15 : f32 to vector<8x128xf32>
      %31 = arith.select %26, %15, %30 : vector<8x128xi1>, vector<8x128xf32>
      %32 = arith.extui %26 : vector<8x128xi1> to vector<8x128xi32>
      %33 = arith.sitofp %32 : vector<8x128xi32> to vector<8x128xf32>
      %34 = arith.subf %33, %31 : vector<8x128xf32>
      %35 = math.absf %29 : vector<8x128xf32>
      %cst_16 = arith.constant 0.000000e+00 : f32
      %36 = vector.broadcast %cst_16 : f32 to vector<8x128xf32>
      %37 = arith.subf %36, %35 : vector<8x128xf32>
      %38 = math.exp %37 : vector<8x128xf32>
      %cst_17 = arith.constant 0.000000e+00 : f32
      %39 = vector.broadcast %cst_17 : f32 to vector<8x128xf32>
      %40 = arith.maximumf %29, %39 : vector<8x128xf32>
      %cst_18 = arith.constant 1.000000e+00 : f32
      %41 = vector.broadcast %cst_18 : f32 to vector<8x128xf32>
      %42 = arith.addf %41, %38 : vector<8x128xf32>
      %43 = math.log %42 : vector<8x128xf32>
      %44 = arith.addf %40, %43 : vector<8x128xf32>
      %45 = arith.subf %44, %29 : vector<8x128xf32>
      %cst_19 = arith.constant 0.000000e+00 : f32
      %46 = vector.broadcast %cst_19 : f32 to vector<8x128xf32>
      %47 = arith.subf %46, %45 : vector<8x128xf32>
      %48 = math.exp %47 : vector<8x128xf32>
      %cst_20 = arith.constant 0.000000e+00 : f32
      %49 = vector.broadcast %cst_20 : f32 to vector<8x128xf32>
      %50 = arith.select %26, %48, %49 : vector<8x128xi1>, vector<8x128xf32>
      %c0_21 = arith.constant 0 : index
      %c0_22 = arith.constant 0 : index
      %c0_23 = arith.constant 0 : index
      %c0_24 = arith.constant 0 : index
      %51 = vector.load %arg4[%c0_21, %c0_22, %c0_23, %c0_24] : memref<1x5x8x128xf32, #tpu.memory_space<vmem>>, vector<1x1x8x128xf32>
      %52 = vector.shape_cast %51 : vector<1x1x8x128xf32> to vector<8x128xf32>
      %53 = arith.mulf %34, %44 : vector<8x128xf32>
      %54 = vector.shape_cast %53 : vector<8x128xf32> to vector<1x8x128xf32>
      %cst_25 = arith.constant dense<0.000000e+00> : vector<8x128xf32>
      %55 = vector.multi_reduction <add>, %54, %cst_25 [0] : vector<1x8x128xf32> to vector<8x128xf32>
      %56 = arith.addf %52, %55 : vector<8x128xf32>
      %c0_26 = arith.constant 0 : index
      %c0_27 = arith.constant 0 : index
      %c0_28 = arith.constant 0 : index
      %c0_29 = arith.constant 0 : index
      %57 = vector.load %arg4[%c0_26, %c0_27, %c0_28, %c0_29] : memref<1x5x8x128xf32, #tpu.memory_space<vmem>>, vector<1x1x8x128xf32>
      %58 = vector.shape_cast %57 : vector<1x1x8x128xf32> to vector<8x128xf32>
      %59 = vector.shape_cast %56 : vector<8x128xf32> to vector<1x1x8x128xf32>
      tpu.vector_store %arg4[%c0_26, %c0_27, %c0_28, %c0_29], %59 {strides = array<i32>} : memref<1x5x8x128xf32, #tpu.memory_space<vmem>>, vector<1x1x8x128xf32>,
      %c0_30 = arith.constant 0 : index
      %c1_31 = arith.constant 1 : index
      %c0_32 = arith.constant 0 : index
      %c0_33 = arith.constant 0 : index
      %60 = vector.load %arg4[%c0_30, %c1_31, %c0_32, %c0_33] : memref<1x5x8x128xf32, #tpu.memory_space<vmem>>, vector<1x1x8x128xf32>
      %61 = vector.shape_cast %60 : vector<1x1x8x128xf32> to vector<8x128xf32>
      %62 = arith.mulf %31, %45 : vector<8x128xf32>
      %63 = vector.shape_cast %62 : vector<8x128xf32> to vector<1x8x128xf32>
      %cst_34 = arith.constant dense<0.000000e+00> : vector<8x128xf32>
      %64 = vector.multi_reduction <add>, %63, %cst_34 [0] : vector<1x8x128xf32> to vector<8x128xf32>
      %65 = arith.addf %61, %64 : vector<8x128xf32>
      %c0_35 = arith.constant 0 : index
      %c1_36 = arith.constant 1 : index
      %c0_37 = arith.constant 0 : index
      %c0_38 = arith.constant 0 : index
      %66 = vector.load %arg4[%c0_35, %c1_36, %c0_37, %c0_38] : memref<1x5x8x128xf32, #tpu.memory_space<vmem>>, vector<1x1x8x128xf32>
      %67 = vector.shape_cast %66 : vector<1x1x8x128xf32> to vector<8x128xf32>
      %68 = vector.shape_cast %65 : vector<8x128xf32> to vector<1x1x8x128xf32>
      tpu.vector_store %arg4[%c0_35, %c1_36, %c0_37, %c0_38], %68 {strides = array<i32>} : memref<1x5x8x128xf32, #tpu.memory_space<vmem>>, vector<1x1x8x128xf32>,
      %c0_39 = arith.constant 0 : index
      %c2 = arith.constant 2 : index
      %c0_40 = arith.constant 0 : index
      %c0_41 = arith.constant 0 : index
      %69 = vector.load %arg4[%c0_39, %c2, %c0_40, %c0_41] : memref<1x5x8x128xf32, #tpu.memory_space<vmem>>, vector<1x1x8x128xf32>
      %70 = vector.shape_cast %69 : vector<1x1x8x128xf32> to vector<8x128xf32>
      %71 = arith.mulf %50, %31 : vector<8x128xf32>
      %72 = vector.shape_cast %71 : vector<8x128xf32> to vector<1x8x128xf32>
      %cst_42 = arith.constant dense<0.000000e+00> : vector<8x128xf32>
      %73 = vector.multi_reduction <add>, %72, %cst_42 [0] : vector<1x8x128xf32> to vector<8x128xf32>
      %74 = arith.addf %70, %73 : vector<8x128xf32>
      %c0_43 = arith.constant 0 : index
      %c2_44 = arith.constant 2 : index
      %c0_45 = arith.constant 0 : index
      %c0_46 = arith.constant 0 : index
      %75 = vector.load %arg4[%c0_43, %c2_44, %c0_45, %c0_46] : memref<1x5x8x128xf32, #tpu.memory_space<vmem>>, vector<1x1x8x128xf32>
      %76 = vector.shape_cast %75 : vector<1x1x8x128xf32> to vector<8x128xf32>
      %77 = vector.shape_cast %74 : vector<8x128xf32> to vector<1x1x8x128xf32>
      tpu.vector_store %arg4[%c0_43, %c2_44, %c0_45, %c0_46], %77 {strides = array<i32>} : memref<1x5x8x128xf32, #tpu.memory_space<vmem>>, vector<1x1x8x128xf32>,
      %c0_47 = arith.constant 0 : index
      %c3 = arith.constant 3 : index
      %c0_48 = arith.constant 0 : index
      %c0_49 = arith.constant 0 : index
      %78 = vector.load %arg4[%c0_47, %c3, %c0_48, %c0_49] : memref<1x5x8x128xf32, #tpu.memory_space<vmem>>, vector<1x1x8x128xf32>
      %79 = vector.shape_cast %78 : vector<1x1x8x128xf32> to vector<8x128xf32>
      %80 = vector.shape_cast %50 : vector<8x128xf32> to vector<1x8x128xf32>
      %cst_50 = arith.constant dense<0.000000e+00> : vector<8x128xf32>
      %81 = vector.multi_reduction <add>, %80, %cst_50 [0] : vector<1x8x128xf32> to vector<8x128xf32>
      %82 = arith.addf %79, %81 : vector<8x128xf32>
      %c0_51 = arith.constant 0 : index
      %c3_52 = arith.constant 3 : index
      %c0_53 = arith.constant 0 : index
      %c0_54 = arith.constant 0 : index
      %83 = vector.load %arg4[%c0_51, %c3_52, %c0_53, %c0_54] : memref<1x5x8x128xf32, #tpu.memory_space<vmem>>, vector<1x1x8x128xf32>
      %84 = vector.shape_cast %83 : vector<1x1x8x128xf32> to vector<8x128xf32>
      %85 = vector.shape_cast %82 : vector<8x128xf32> to vector<1x1x8x128xf32>
      tpu.vector_store %arg4[%c0_51, %c3_52, %c0_53, %c0_54], %85 {strides = array<i32>} : memref<1x5x8x128xf32, #tpu.memory_space<vmem>>, vector<1x1x8x128xf32>,
      %c0_55 = arith.constant 0 : index
      %c4 = arith.constant 4 : index
      %c0_56 = arith.constant 0 : index
      %c0_57 = arith.constant 0 : index
      %86 = vector.load %arg4[%c0_55, %c4, %c0_56, %c0_57] : memref<1x5x8x128xf32, #tpu.memory_space<vmem>>, vector<1x1x8x128xf32>
      %87 = vector.shape_cast %86 : vector<1x1x8x128xf32> to vector<8x128xf32>
      %88 = vector.shape_cast %31 : vector<8x128xf32> to vector<1x8x128xf32>
      %cst_58 = arith.constant dense<0.000000e+00> : vector<8x128xf32>
      %89 = vector.multi_reduction <add>, %88, %cst_58 [0] : vector<1x8x128xf32> to vector<8x128xf32>
      %90 = arith.addf %87, %89 : vector<8x128xf32>
      %c0_59 = arith.constant 0 : index
      %c4_60 = arith.constant 4 : index
      %c0_61 = arith.constant 0 : index
      %c0_62 = arith.constant 0 : index
      %91 = vector.load %arg4[%c0_59, %c4_60, %c0_61, %c0_62] : memref<1x5x8x128xf32, #tpu.memory_space<vmem>>, vector<1x1x8x128xf32>
      %92 = vector.shape_cast %91 : vector<1x1x8x128xf32> to vector<8x128xf32>
      %93 = vector.shape_cast %90 : vector<8x128xf32> to vector<1x1x8x128xf32>
      tpu.vector_store %arg4[%c0_59, %c4_60, %c0_61, %c0_62], %93 {strides = array<i32>} : memref<1x5x8x128xf32, #tpu.memory_space<vmem>>, vector<1x1x8x128xf32>,
    } else {
    }
    %c0_i32_3 = arith.constant 0 : i32
    %6 = arith.cmpi slt, %arg1, %c0_i32_3 : i32
    %7 = arith.extui %6 : i1 to i32
    %c0_i32_4 = arith.constant 0 : i32
    %8 = arith.cmpi ne, %7, %c0_i32_4 : i32
    scf.if %8 {
      %c0 = arith.constant 0 : index
      %c0_5 = arith.constant 0 : index
      %c0_6 = arith.constant 0 : index
      %c0_7 = arith.constant 0 : index
      %9 = vector.load %arg2[%c0, %c0_5, %c0_6, %c0_7] : memref<1x2x8x128xf32, #tpu.memory_space<vmem>>, vector<1x1x8x128xf32>
      %10 = vector.shape_cast %9 : vector<1x1x8x128xf32> to vector<8x128xf32>
      %c0_8 = arith.constant 0 : index
      %c1 = arith.constant 1 : index
      %c0_9 = arith.constant 0 : index
      %c0_10 = arith.constant 0 : index
      %11 = vector.load %arg2[%c0_8, %c1, %c0_9, %c0_10] : memref<1x2x8x128xf32, #tpu.memory_space<vmem>>, vector<1x1x8x128xf32>
      %12 = vector.shape_cast %11 : vector<1x1x8x128xf32> to vector<8x128xf32>
      %c0_11 = arith.constant 0 : index
      %c0_12 = arith.constant 0 : index
      %c0_13 = arith.constant 0 : index
      %13 = vector.load %arg3[%c0_11, %c0_12, %c0_13] : memref<1x8x128xi32, #tpu.memory_space<vmem>>, vector<1x8x128xi32>
      %14 = vector.shape_cast %13 : vector<1x8x128xi32> to vector<8x128xi32>
      %15 = arith.sitofp %14 : vector<8x128xi32> to vector<8x128xf32>
      %16 = arith.subf %12, %10 : vector<8x128xf32>
      %cst = arith.constant 1.000000e+00 : f32
      %17 = vector.broadcast %cst : f32 to vector<8x128xf32>
      %18 = arith.subf %17, %15 : vector<8x128xf32>
      %19 = math.absf %16 : vector<8x128xf32>
      %cst_14 = arith.constant 0.000000e+00 : f32
      %20 = vector.broadcast %cst_14 : f32 to vector<8x128xf32>
      %21 = arith.subf %20, %19 : vector<8x128xf32>
      %22 = math.exp %21 : vector<8x128xf32>
      %cst_15 = arith.constant 0.000000e+00 : f32
      %23 = vector.broadcast %cst_15 : f32 to vector<8x128xf32>
      %24 = arith.maximumf %16, %23 : vector<8x128xf32>
      %cst_16 = arith.constant 1.000000e+00 : f32
      %25 = vector.broadcast %cst_16 : f32 to vector<8x128xf32>
      %26 = arith.addf %25, %22 : vector<8x128xf32>
      %27 = math.log %26 : vector<8x128xf32>
      %28 = arith.addf %24, %27 : vector<8x128xf32>
      %29 = arith.subf %28, %16 : vector<8x128xf32>
      %cst_17 = arith.constant 0.000000e+00 : f32
      %30 = vector.broadcast %cst_17 : f32 to vector<8x128xf32>
      %31 = arith.subf %30, %29 : vector<8x128xf32>
      %32 = math.exp %31 : vector<8x128xf32>
      %c0_18 = arith.constant 0 : index
      %c0_19 = arith.constant 0 : index
      %c0_20 = arith.constant 0 : index
      %c0_21 = arith.constant 0 : index
      %33 = vector.load %arg4[%c0_18, %c0_19, %c0_20, %c0_21] : memref<1x5x8x128xf32, #tpu.memory_space<vmem>>, vector<1x1x8x128xf32>
      %34 = vector.shape_cast %33 : vector<1x1x8x128xf32> to vector<8x128xf32>
      %35 = arith.mulf %18, %28 : vector<8x128xf32>
      %36 = vector.shape_cast %35 : vector<8x128xf32> to vector<1x8x128xf32>
      %cst_22 = arith.constant dense<0.000000e+00> : vector<8x128xf32>
      %37 = vector.multi_reduction <add>, %36, %cst_22 [0] : vector<1x8x128xf32> to vector<8x128xf32>
      %38 = arith.addf %34, %37 : vector<8x128xf32>
      %c0_23 = arith.constant 0 : index
      %c0_24 = arith.constant 0 : index
      %c0_25 = arith.constant 0 : index
      %c0_26 = arith.constant 0 : index
      %39 = vector.load %arg4[%c0_23, %c0_24, %c0_25, %c0_26] : memref<1x5x8x128xf32, #tpu.memory_space<vmem>>, vector<1x1x8x128xf32>
      %40 = vector.shape_cast %39 : vector<1x1x8x128xf32> to vector<8x128xf32>
      %41 = vector.shape_cast %38 : vector<8x128xf32> to vector<1x1x8x128xf32>
      tpu.vector_store %arg4[%c0_23, %c0_24, %c0_25, %c0_26], %41 {strides = array<i32>} : memref<1x5x8x128xf32, #tpu.memory_space<vmem>>, vector<1x1x8x128xf32>,
      %c0_27 = arith.constant 0 : index
      %c1_28 = arith.constant 1 : index
      %c0_29 = arith.constant 0 : index
      %c0_30 = arith.constant 0 : index
      %42 = vector.load %arg4[%c0_27, %c1_28, %c0_29, %c0_30] : memref<1x5x8x128xf32, #tpu.memory_space<vmem>>, vector<1x1x8x128xf32>
      %43 = vector.shape_cast %42 : vector<1x1x8x128xf32> to vector<8x128xf32>
      %44 = arith.mulf %15, %29 : vector<8x128xf32>
      %45 = vector.shape_cast %44 : vector<8x128xf32> to vector<1x8x128xf32>
      %cst_31 = arith.constant dense<0.000000e+00> : vector<8x128xf32>
      %46 = vector.multi_reduction <add>, %45, %cst_31 [0] : vector<1x8x128xf32> to vector<8x128xf32>
      %47 = arith.addf %43, %46 : vector<8x128xf32>
      %c0_32 = arith.constant 0 : index
      %c1_33 = arith.constant 1 : index
      %c0_34 = arith.constant 0 : index
      %c0_35 = arith.constant 0 : index
      %48 = vector.load %arg4[%c0_32, %c1_33, %c0_34, %c0_35] : memref<1x5x8x128xf32, #tpu.memory_space<vmem>>, vector<1x1x8x128xf32>
      %49 = vector.shape_cast %48 : vector<1x1x8x128xf32> to vector<8x128xf32>
      %50 = vector.shape_cast %47 : vector<8x128xf32> to vector<1x1x8x128xf32>
      tpu.vector_store %arg4[%c0_32, %c1_33, %c0_34, %c0_35], %50 {strides = array<i32>} : memref<1x5x8x128xf32, #tpu.memory_space<vmem>>, vector<1x1x8x128xf32>,
      %c0_36 = arith.constant 0 : index
      %c2 = arith.constant 2 : index
      %c0_37 = arith.constant 0 : index
      %c0_38 = arith.constant 0 : index
      %51 = vector.load %arg4[%c0_36, %c2, %c0_37, %c0_38] : memref<1x5x8x128xf32, #tpu.memory_space<vmem>>, vector<1x1x8x128xf32>
      %52 = vector.shape_cast %51 : vector<1x1x8x128xf32> to vector<8x128xf32>
      %53 = arith.mulf %32, %15 : vector<8x128xf32>
      %54 = vector.shape_cast %53 : vector<8x128xf32> to vector<1x8x128xf32>
      %cst_39 = arith.constant dense<0.000000e+00> : vector<8x128xf32>
      %55 = vector.multi_reduction <add>, %54, %cst_39 [0] : vector<1x8x128xf32> to vector<8x128xf32>
      %56 = arith.addf %52, %55 : vector<8x128xf32>
      %c0_40 = arith.constant 0 : index
      %c2_41 = arith.constant 2 : index
      %c0_42 = arith.constant 0 : index
      %c0_43 = arith.constant 0 : index
      %57 = vector.load %arg4[%c0_40, %c2_41, %c0_42, %c0_43] : memref<1x5x8x128xf32, #tpu.memory_space<vmem>>, vector<1x1x8x128xf32>
      %58 = vector.shape_cast %57 : vector<1x1x8x128xf32> to vector<8x128xf32>
      %59 = vector.shape_cast %56 : vector<8x128xf32> to vector<1x1x8x128xf32>
      tpu.vector_store %arg4[%c0_40, %c2_41, %c0_42, %c0_43], %59 {strides = array<i32>} : memref<1x5x8x128xf32, #tpu.memory_space<vmem>>, vector<1x1x8x128xf32>,
      %c0_44 = arith.constant 0 : index
      %c3 = arith.constant 3 : index
      %c0_45 = arith.constant 0 : index
      %c0_46 = arith.constant 0 : index
      %60 = vector.load %arg4[%c0_44, %c3, %c0_45, %c0_46] : memref<1x5x8x128xf32, #tpu.memory_space<vmem>>, vector<1x1x8x128xf32>
      %61 = vector.shape_cast %60 : vector<1x1x8x128xf32> to vector<8x128xf32>
      %62 = vector.shape_cast %32 : vector<8x128xf32> to vector<1x8x128xf32>
      %cst_47 = arith.constant dense<0.000000e+00> : vector<8x128xf32>
      %63 = vector.multi_reduction <add>, %62, %cst_47 [0] : vector<1x8x128xf32> to vector<8x128xf32>
      %64 = arith.addf %61, %63 : vector<8x128xf32>
      %c0_48 = arith.constant 0 : index
      %c3_49 = arith.constant 3 : index
      %c0_50 = arith.constant 0 : index
      %c0_51 = arith.constant 0 : index
      %65 = vector.load %arg4[%c0_48, %c3_49, %c0_50, %c0_51] : memref<1x5x8x128xf32, #tpu.memory_space<vmem>>, vector<1x1x8x128xf32>
      %66 = vector.shape_cast %65 : vector<1x1x8x128xf32> to vector<8x128xf32>
      %67 = vector.shape_cast %64 : vector<8x128xf32> to vector<1x1x8x128xf32>
      tpu.vector_store %arg4[%c0_48, %c3_49, %c0_50, %c0_51], %67 {strides = array<i32>} : memref<1x5x8x128xf32, #tpu.memory_space<vmem>>, vector<1x1x8x128xf32>,
      %c0_52 = arith.constant 0 : index
      %c4 = arith.constant 4 : index
      %c0_53 = arith.constant 0 : index
      %c0_54 = arith.constant 0 : index
      %68 = vector.load %arg4[%c0_52, %c4, %c0_53, %c0_54] : memref<1x5x8x128xf32, #tpu.memory_space<vmem>>, vector<1x1x8x128xf32>
      %69 = vector.shape_cast %68 : vector<1x1x8x128xf32> to vector<8x128xf32>
      %70 = vector.shape_cast %15 : vector<8x128xf32> to vector<1x8x128xf32>
      %cst_55 = arith.constant dense<0.000000e+00> : vector<8x128xf32>
      %71 = vector.multi_reduction <add>, %70, %cst_55 [0] : vector<1x8x128xf32> to vector<8x128xf32>
      %72 = arith.addf %69, %71 : vector<8x128xf32>
      %c0_56 = arith.constant 0 : index
      %c4_57 = arith.constant 4 : index
      %c0_58 = arith.constant 0 : index
      %c0_59 = arith.constant 0 : index
      %73 = vector.load %arg4[%c0_56, %c4_57, %c0_58, %c0_59] : memref<1x5x8x128xf32, #tpu.memory_space<vmem>>, vector<1x1x8x128xf32>
      %74 = vector.shape_cast %73 : vector<1x1x8x128xf32> to vector<8x128xf32>
      %75 = vector.shape_cast %72 : vector<8x128xf32> to vector<1x1x8x128xf32>
      tpu.vector_store %arg4[%c0_56, %c4_57, %c0_58, %c0_59], %75 {strides = array<i32>} : memref<1x5x8x128xf32, #tpu.memory_space<vmem>>, vector<1x1x8x128xf32>,
    } else {
    }
    return
  }
  func.func @transform_0(%arg0: i32, %arg1: i32) -> (i32, i32, i32, i32) {
    %c0_i32 = arith.constant 0 : i32
    %c0_i32_0 = arith.constant 0 : i32
    %c0_i32_1 = arith.constant 0 : i32
    return %arg0, %c0_i32, %arg1, %c0_i32_0 : i32, i32, i32, i32
  }
  func.func @transform_1(%arg0: i32, %arg1: i32) -> (i32, i32, i32) {
    %c0_i32 = arith.constant 0 : i32
    %c0_i32_0 = arith.constant 0 : i32
    return %arg0, %arg1, %c0_i32 : i32, i32, i32
  }
  func.func @transform_2(%arg0: i32, %arg1: i32) -> (i32, i32, i32, i32) {
    %c0_i32 = arith.constant 0 : i32
    %c0_i32_0 = arith.constant 0 : i32
    %c0_i32_1 = arith.constant 0 : i32
    %c0_i32_2 = arith.constant 0 : i32
    return %arg0, %c0_i32, %c0_i32_0, %c0_i32_1 : i32, i32, i32, i32
  }
}

</mosaic_0001>

<llo_original>
// kernel: tpu_custom_call.1
$region0: #{tpu_custom_call.1}
  #allocation0 [shape = 'u32[]', space=smem, size = 0x4, offset = 0x4, fixed_abs, tag = 'smem constant byte address 0x4 - core index']
  #allocation1 [shape = 'u32[144,128]{1,0:T(1,128)}', space=vmem, size = 0x12000, scoped, tag = 'internal scratch']
  %s0 = inlined_call_operand.hbm [shape: f32[2,2,8,128], index: 0, kind: input, shape index: {}]
  %s1 = inlined_call_operand.hbm [shape: s32[2,8,128], index: 1, kind: input, shape index: {}]
  %s2 = inlined_call_operand.hbm [shape: f32[2,5,8,128], index: 2, kind: output, shape index: {}]
  %s3 = sld [smem:[#allocation0]]
  $region57: #{tpu_custom_call.1} parent=0
    _
  %s5 = ssub.s32 1, %s3
  %s6 = scalar_select 0, %s5, %s3
  $region1: #{tpu_custom_call.1} parent=0
    #allocation2 [shape = 'u8[16384]{0}', space=vmem, size = 0x4000, scoped, tag = 'input window, operand 0']
    #allocation3 [shape = 's32[2]{0}', space=sflag, size = 0x8, scoped, tag = 'scoped memory for tpu_custom_call.1']
    #allocation4 [shape = 's32[2]{0}', space=sflag, size = 0x8, scoped, tag = 'scoped memory for tpu_custom_call.1']
    #allocation5 [shape = 'u8[8192]{0}', space=vmem, size = 0x2000, scoped, tag = 'input window, operand 1']
    #allocation6 [shape = 's32[2]{0}', space=sflag, size = 0x8, scoped, tag = 'scoped memory for tpu_custom_call.1']
    #allocation7 [shape = 'u8[40960]{0}', space=vmem, size = 0xa000, scoped, tag = 'output window, operand 0']
    %7 = vsyncpa [#allocation3], 0
    %s8 = scalar_lea.sflag [#allocation3], 1
    %9 = vsyncpa %s8, 0
    %10 = vsyncpa [#allocation6], 0
    %s11 = scalar_lea.sflag [#allocation6], 1
    %12 = vsyncpa %s11, 0
    %13 = vsyncpa [#allocation4], 0
    %s14 = scalar_lea.sflag [#allocation4], 1
    %15 = vsyncpa %s14, 0
    loop: start=0, step=1, limit=4
    $region2: #{tpu_custom_call.1} parent=1 // loop_pre_header
      _
    $region3: #{tpu_custom_call.1} parent=1 // loop_header
      %s17 = sphi 0, %s21
      %p18 = scmp.ge.s32.totalorder %s17, 4
      %s24 = sphi 0, %s36
      %s25 = sphi 0, %s32
      %s26 = sphi 0, %s24
      %s27 = sphi 0, %s25
      %s28 = sphi 0, %s26
      %s29 = sphi 0, %s27
      %s41 = sphi 0, %s43
      %s44 = sphi 0, %s41
      %s45 = sphi 0, %s44
      %s61 = sphi 0, %s45
      %s69 = sphi 0, %s71
      %s72 = sphi 0, %s69
      %s73 = sphi 0, %s72
      %s89 = sphi 0, %s73
      %s95 = sphi 0, %s97
      %s98 = sphi 0, %s95
      %s99 = sphi 0, %s98
      %s115 = sphi 0, %s99
    $region4: #{tpu_custom_call.1} parent=1 // loop_header_branch
      %20 = sbr.rel (%p18) target = $region8
    $region5: #{tpu_custom_call.1} parent=1 // loop_body
      %s22 = ssub.s32 %s17, 1
      %s23 = ssub.s32 %s17, 2
      %s30 = sadd.s32 1, %s25
      %p31 = scmp.ge.s32.totalorder %s30, 1
      %s32 = scalar_select %p31, 0, %s30
      %s33 = sadd.s32 1, %s24
      %s34 = scalar_select %p31, %s33, %s24
      %p35 = scmp.ge.s32.totalorder %s34, 2
      %s36 = scalar_select %p35, 0, %s34
      %s37 = ssub.s32 %s24, %s36
      %s38 = ssub.s32 %s25, %s32
      %s39 = sor.u32 %s37, %s38
      %p40 = scmp.eq.s32.totalorder %s39, 0
      %s42 = sadd.s32 %s41, 1
      %s43 = scalar_select %p40, %s41, %s42
      %p46 = pneg %p40
      %p47 = scmp.eq.s32.totalorder %s17, 1
      %p48 = por %p46, %p47
      %p49 = scmp.ne.s32.totalorder %s41, %s44
      %p50 = scmp.eq.s32.totalorder %s17, 0
      %p51 = por %p49, %p50
      %p52 = scmp.ne.s32.totalorder %s41, %s44
      %p53 = scmp.eq.s32.totalorder %s22, 1
      %p54 = por %p52, %p53
      %p55 = scmp.ne.s32.totalorder %s44, %s45
      %p56 = scmp.eq.s32.totalorder %s22, 0
      %p57 = por %p55, %p56
      %p58 = scmp.ne.s32.totalorder %s44, %s45
      %p59 = scmp.eq.s32.totalorder %s23, 1
      %p60 = por %p58, %p59
      %p62 = scmp.ne.s32.totalorder %s45, %s61
      %p63 = scmp.eq.s32.totalorder %s23, 0
      %p64 = por %p62, %p63
      %s65 = ssub.s32 %s24, %s36
      %s66 = ssub.s32 %s25, %s32
      %s67 = sor.u32 %s65, %s66
      %p68 = scmp.eq.s32.totalorder %s67, 0
      %s70 = sadd.s32 %s69, 1
      %s71 = scalar_select %p68, %s69, %s70
      %p74 = pneg %p68
      %p75 = scmp.eq.s32.totalorder %s17, 1
      %p76 = por %p74, %p75
      %p77 = scmp.ne.s32.totalorder %s69, %s72
      %p78 = scmp.eq.s32.totalorder %s17, 0
      %p79 = por %p77, %p78
      %p80 = scmp.ne.s32.totalorder %s69, %s72
      %p81 = scmp.eq.s32.totalorder %s22, 1
      %p82 = por %p80, %p81
      %p83 = scmp.ne.s32.totalorder %s72, %s73
      %p84 = scmp.eq.s32.totalorder %s22, 0
      %p85 = por %p83, %p84
      %p86 = scmp.ne.s32.totalorder %s72, %s73
      %p87 = scmp.eq.s32.totalorder %s23, 1
      %p88 = por %p86, %p87
      %p90 = scmp.ne.s32.totalorder %s73, %s89
      %p91 = scmp.eq.s32.totalorder %s23, 0
      %p92 = por %p90, %p91
      %s93 = ssub.s32 %s24, %s36
      %p94 = scmp.eq.s32.totalorder %s93, 0
      %s96 = sadd.s32 %s95, 1
      %s97 = scalar_select %p94, %s95, %s96
      %p100 = pneg %p94
      %p101 = scmp.eq.s32.totalorder %s17, 1
      %p102 = por %p100, %p101
      %p103 = scmp.ne.s32.totalorder %s95, %s98
      %p104 = scmp.eq.s32.totalorder %s17, 0
      %p105 = por %p103, %p104
      %p106 = scmp.ne.s32.totalorder %s95, %s98
      %p107 = scmp.eq.s32.totalorder %s22, 1
      %p108 = por %p106, %p107
      %p109 = scmp.ne.s32.totalorder %s98, %s99
      %p110 = scmp.eq.s32.totalorder %s22, 0
      %p111 = por %p109, %p110
      %p112 = scmp.ne.s32.totalorder %s98, %s99
      %p113 = scmp.eq.s32.totalorder %s23, 1
      %p114 = por %p112, %p113
      %p116 = scmp.ne.s32.totalorder %s99, %s115
      %p117 = scmp.eq.s32.totalorder %s23, 0
      %p118 = por %p116, %p117
      %p119 = scmp.le.s32.totalorder 1, %s17
      %p120 = scmp.lt.s32.totalorder %s17, 3
      %p121 = pnand %p119, %p120
      %p122 = pneg %p121
      // Predicated region
      $region9: #{tpu_custom_call.1} parent=5 // pred_check
        _
      $region10: #{tpu_custom_call.1} parent=5 // pred_check_branch
        %124 = sbr.rel (%p121) target = $region12
      $region11: #{tpu_custom_call.1} parent=5 // pred_region
        %s125 = ssub.s32 %s17, 1
      $region12: #{tpu_custom_call.1} parent=5 // pred_fallthru
        _
      %p126 = scmp.lt.s32.totalorder %s17, 2
      // Predicated region
      $region13: #{tpu_custom_call.1} parent=5 // pred_check
        %p127 = pneg %p126
      $region14: #{tpu_custom_call.1} parent=5 // pred_check_branch
        %129 = sbr.rel (%p127) target = $region16
      $region15: #{tpu_custom_call.1} parent=5 // pred_region
        // Predicated region
        $region17: #{tpu_custom_call.1} parent=15 // pred_check
          %p130 = pneg %p51
        $region18: #{tpu_custom_call.1} parent=15 // pred_check_branch
          %132 = sbr.rel (%p130) target = $region20
        $region19: #{tpu_custom_call.1} parent=15 // pred_region
          %s133 = sand.u32 %s41, 1
          %s134 = scalar_lea.sflag [#allocation3], %s133
          %s135 = sand.u32 %s41, 1
          %s136 = smul.addr %s135, 16
          %s137 = scalar_lea.vmem [#allocation2], %s136
          %s139 = ssub.s32 256, 256
          %140 = vsyncadd %s134, %s139
          %s141 = smul.addr %s24, 2
          %s142 = sadd.s32 %s25, %s141
          %s143 = smul.addr %s142, 128
          %s144 = scalar_lea.hbm %s0, %s143
          %s145 = sshll.u32 %s137, 4
          %s146 = int_to_ptr.vmem [resolvable:$true] %s145
          %151 = dma.hbm_to_vmem [thread:$0]  %s144, 256, %s146, %s134, 128, 128, 8
        $region20: #{tpu_custom_call.1} parent=15 // pred_fallthru
          _
        // Predicated region
        $region21: #{tpu_custom_call.1} parent=15 // pred_check
          %p152 = pneg %p79
        $region22: #{tpu_custom_call.1} parent=15 // pred_check_branch
          %154 = sbr.rel (%p152) target = $region24
        $region23: #{tpu_custom_call.1} parent=15 // pred_region
          %s155 = sand.u32 %s69, 1
          %s156 = scalar_lea.sflag [#allocation6], %s155
          %s157 = sand.u32 %s69, 1
          %s158 = smul.addr %s157, 8
          %s159 = scalar_lea.vmem [#allocation5], %s158
          %s161 = ssub.s32 128, 128
          %162 = vsyncadd %s156, %s161
          %s163 = sadd.s32 %s25, %s24
          %s164 = smul.addr %s163, 128
          %s165 = scalar_lea.hbm %s1, %s164
          %s167 = sshll.u32 %s159, 4
          %s168 = int_to_ptr.vmem [resolvable:$true] %s167
          %170 = dma.hbm_to_vmem [thread:$0]  %s165, 128, %s168, %s156
        $region24: #{tpu_custom_call.1} parent=15 // pred_fallthru
          _
      $region16: #{tpu_custom_call.1} parent=5 // pred_fallthru
        _
      %p171 = scmp.le.s32.totalorder 1, %s17
      %p172 = scmp.lt.s32.totalorder %s17, 3
      %p173 = pnand %p171, %p172
      %p174 = pneg %p173
      // Predicated region
      $region25: #{tpu_custom_call.1} parent=5 // pred_check
        _
      $region26: #{tpu_custom_call.1} parent=5 // pred_check_branch
        %176 = sbr.rel (%p173) target = $region28
      $region27: #{tpu_custom_call.1} parent=5 // pred_region
        %s177 = ssub.s32 %s17, 1
        %s178 = sand.u32 %s44, 1
        %s179 = scalar_lea.sflag [#allocation3], %s178
        %s180 = sand.u32 %s44, 1
        %s181 = smul.addr %s180, 16
        %s182 = scalar_lea.vmem [#allocation2], %s181
        // Predicated region
        $region29: #{tpu_custom_call.1} parent=27 // pred_check
          %p183 = pneg %p57
        $region30: #{tpu_custom_call.1} parent=27 // pred_check_branch
          %185 = sbr.rel (%p183) target = $region32
        $region31: #{tpu_custom_call.1} parent=27 // pred_region
          %186 = dma.done %s179, 256
        $region32: #{tpu_custom_call.1} parent=27 // pred_fallthru
          _
        %s187 = sand.u32 %s72, 1
        %s188 = scalar_lea.sflag [#allocation6], %s187
        %s189 = sand.u32 %s72, 1
        %s190 = smul.addr %s189, 8
        %s191 = scalar_lea.vmem [#allocation5], %s190
        // Predicated region
        $region33: #{tpu_custom_call.1} parent=27 // pred_check
          %p192 = pneg %p85
        $region34: #{tpu_custom_call.1} parent=27 // pred_check_branch
          %194 = sbr.rel (%p192) target = $region36
        $region35: #{tpu_custom_call.1} parent=27 // pred_region
          %195 = dma.done %s188, 128
        $region36: #{tpu_custom_call.1} parent=27 // pred_fallthru
          _
        %s196 = sand.u32 %s44, 1
        %s197 = scalar_lea.sflag [#allocation3], %s196
        %s198 = sand.u32 %s44, 1
        %s199 = smul.addr %s198, 16
        %s200 = scalar_lea.vmem [#allocation2], %s199
        %p201 = pneg %p57
        %p202 = pneg %p54
        %s203 = sand.u32 %s72, 1
        %s204 = scalar_lea.sflag [#allocation6], %s203
        %s205 = sand.u32 %s72, 1
        %s206 = smul.addr %s205, 8
        %s207 = scalar_lea.vmem [#allocation5], %s206
        %p208 = pneg %p85
        %p209 = pneg %p82
        %p210 = pneg %p111
        %p211 = pneg %p108
        %s212 = sand.u32 %s98, 1
        %s213 = scalar_lea.sflag [#allocation4], %s212
        %s214 = sand.u32 %s98, 1
        %s215 = smul.addr %s214, 40
        %s216 = scalar_lea.vmem [#allocation7], %s215
        %p217 = scmp.eq.s32.totalorder %s27, 0
        // Predicated region
        $region37: #{tpu_custom_call.1} parent=27 // pred_check
          %p218 = pneg %p217
        $region38: #{tpu_custom_call.1} parent=27 // pred_check_branch
          %220 = sbr.rel (%p218) target = $region40
        $region39: #{tpu_custom_call.1} parent=27 // pred_region
          %221 = vst [vmem:[%s216] sm:$0xff] 0.0
          %222 = vst [vmem:[%s216 + $0x8] sm:$0xff] 0.0
          %223 = vst [vmem:[%s216 + $0x10] sm:$0xff] 0.0
          %224 = vst [vmem:[%s216 + $0x18] sm:$0xff] 0.0
          %225 = vst [vmem:[%s216 + $0x20] sm:$0xff] 0.0
          %v226 = vld [vmem:[%s182] sm:$0xff]
          %s227 = scalar_lea.vmem %s182, 8 [#allocation2]
          %v228 = vld [vmem:[%s227] sm:$0xff]
          %v229 = vld [vmem:[%s191] sm:$0xff]
          %v230 = vcvt.s32.f32 %v229
          %v231 = vlaneseq
          %v232 = vshrl.u32 %v231, 7
          %v233 = vlaneseq
          %v234 = vand.u32 %v233, 127
          %s235 = smul.u32 %s27, 8
          %v236 = vstv %s235
          %v237 = vadd.s32 %v236, %v232
          %v238 = vmul.u32 %v237, 128
          %v239 = vadd.s32 %v238, %v234
          %vm240 = vcmp.lt.s32.totalorder %v239, 512
          %v241 = vsub.f32 %v228, %v226
          %v242 = vsel %vm240, %v241, 0.0
          %v243 = vsel %vm240, %v230, 0.0
          %v244 = vsel %vm240, 1, 0
          %v245 = vcvt.s32.f32 %v244
          %v246 = vsub.f32 %v245, %v243
          %v247 = vand.u32 2147483647, %v242
          %v248 = vsub.f32 0.0, %v247
          %v249 = vmul.f32 %v248, 1.442695
          %v250 = vpow.pop %v249
          %v251 = vmax.f32 %v242, 0.0
          %v252 = vadd.f32 %v250, 1.0
          %v253 = vlog2.pop %v252
          %v254 = vmul.f32 %v253, 0.6931472
          %v255 = vadd.f32 %v251, %v254
          %v256 = vsub.f32 %v255, %v242
          %v257 = vsub.f32 0.0, %v256
          %v258 = vmul.f32 %v257, 1.442695
          %v259 = vpow.pop %v258
          %v260 = vsel %vm240, %v259, 0.0
          %v261 = vld [vmem:[%s216] sm:$0xff]
          %v262 = vmul.f32 %v246, %v255
          %v263 = vadd.f32 %v262, 0.0
          %v264 = vadd.f32 %v261, %v263
          %265 = vst [vmem:[%s216] sm:$0xff] %v264
          %s266 = scalar_lea.vmem %s216, 8 [#allocation7]
          %v267 = vld [vmem:[%s266] sm:$0xff]
          %v268 = vmul.f32 %v243, %v256
          %v269 = vadd.f32 %v268, 0.0
          %v270 = vadd.f32 %v267, %v269
          %271 = vst [vmem:[%s266] sm:$0xff] %v270
          %s272 = scalar_lea.vmem %s216, 16 [#allocation7]
          %v273 = vld [vmem:[%s272] sm:$0xff]
          %v274 = vmul.f32 %v260, %v243
          %v275 = vadd.f32 %v274, 0.0
          %v276 = vadd.f32 %v273, %v275
          %277 = vst [vmem:[%s272] sm:$0xff] %v276
          %s278 = scalar_lea.vmem %s216, 24 [#allocation7]
          %v279 = vld [vmem:[%s278] sm:$0xff]
          %v280 = vadd.f32 %v260, 0.0
          %v281 = vadd.f32 %v279, %v280
          %282 = vst [vmem:[%s278] sm:$0xff] %v281
          %s283 = scalar_lea.vmem %s216, 32 [#allocation7]
          %v284 = vld [vmem:[%s283] sm:$0xff]
          %v285 = vadd.f32 %v243, 0.0
          %v286 = vadd.f32 %v284, %v285
          %287 = vst [vmem:[%s283] sm:$0xff] %v286
        $region40: #{tpu_custom_call.1} parent=27 // pred_fallthru
          _
        %p288 = scmp.lt.s32.totalorder %s27, 0
        // Predicated region
        $region41: #{tpu_custom_call.1} parent=27 // pred_check
          %p289 = pneg %p288
        $region42: #{tpu_custom_call.1} parent=27 // pred_check_branch
          %291 = sbr.rel (%p289) target = $region44
        $region43: #{tpu_custom_call.1} parent=27 // pred_region
          %v292 = vld [vmem:[%s182] sm:$0xff]
          %s293 = scalar_lea.vmem %s182, 8 [#allocation2]
          %v294 = vld [vmem:[%s293] sm:$0xff]
          %v295 = vld [vmem:[%s191] sm:$0xff]
          %v296 = vcvt.s32.f32 %v295
          %v297 = vsub.f32 %v294, %v292
          %v298 = vsub.f32 1.0, %v296
          %v299 = vand.u32 2147483647, %v297
          %v300 = vsub.f32 0.0, %v299
          %v301 = vmul.f32 %v300, 1.442695
          %v302 = vpow.pop %v301
          %v303 = vmax.f32 %v297, 0.0
          %v304 = vadd.f32 %v302, 1.0
          %v305 = vlog2.pop %v304
          %v306 = vmul.f32 %v305, 0.6931472
          %v307 = vadd.f32 %v303, %v306
          %v308 = vsub.f32 %v307, %v297
          %v309 = vsub.f32 0.0, %v308
          %v310 = vmul.f32 %v309, 1.442695
          %v311 = vpow.pop %v310
          %v312 = vld [vmem:[%s216] sm:$0xff]
          %v313 = vmul.f32 %v298, %v307
          %v314 = vadd.f32 %v313, 0.0
          %v315 = vadd.f32 %v312, %v314
          %316 = vst [vmem:[%s216] sm:$0xff] %v315
          %s317 = scalar_lea.vmem %s216, 8 [#allocation7]
          %v318 = vld [vmem:[%s317] sm:$0xff]
          %v319 = vmul.f32 %v296, %v308
          %v320 = vadd.f32 %v319, 0.0
          %v321 = vadd.f32 %v318, %v320
          %322 = vst [vmem:[%s317] sm:$0xff] %v321
          %s323 = scalar_lea.vmem %s216, 16 [#allocation7]
          %v324 = vld [vmem:[%s323] sm:$0xff]
          %v325 = vmul.f32 %v311, %v296
          %v326 = vadd.f32 %v325, 0.0
          %v327 = vadd.f32 %v324, %v326
          %328 = vst [vmem:[%s323] sm:$0xff] %v327
          %s329 = scalar_lea.vmem %s216, 24 [#allocation7]
          %v330 = vld [vmem:[%s329] sm:$0xff]
          %v331 = vadd.f32 %v311, 0.0
          %v332 = vadd.f32 %v330, %v331
          %333 = vst [vmem:[%s329] sm:$0xff] %v332
          %s334 = scalar_lea.vmem %s216, 32 [#allocation7]
          %v335 = vld [vmem:[%s334] sm:$0xff]
          %v336 = vadd.f32 %v296, 0.0
          %v337 = vadd.f32 %v335, %v336
          %338 = vst [vmem:[%s334] sm:$0xff] %v337
        $region44: #{tpu_custom_call.1} parent=27 // pred_fallthru
          _
        %s339 = sand.u32 %s98, 1
        %s340 = scalar_lea.sflag [#allocation4], %s339
        %s341 = sand.u32 %s98, 1
        %s342 = smul.addr %s341, 40
        %s343 = scalar_lea.vmem [#allocation7], %s342
        // Predicated region
        $region45: #{tpu_custom_call.1} parent=27 // pred_check
          %p344 = pneg %p108
        $region46: #{tpu_custom_call.1} parent=27 // pred_check_branch
          %346 = sbr.rel (%p344) target = $region48
        $region47: #{tpu_custom_call.1} parent=27 // pred_region
          %s348 = ssub.s32 640, 640
          %349 = vsyncadd %s340, %s348
          %s350 = smul.addr %s26, 5
          %s351 = smul.addr %s350, 128
          %s352 = scalar_lea.hbm %s2, %s351
          %s353 = sshll.u32 %s343, 4
          %s354 = int_to_ptr.vmem [resolvable:$true] %s353
          %359 = dma.vmem_to_hbm [thread:$0]  %s354, 640, %s352, %s340, 128, 128, 8
        $region48: #{tpu_custom_call.1} parent=27 // pred_fallthru
          _
      $region28: #{tpu_custom_call.1} parent=5 // pred_fallthru
        _
      %p360 = scmp.le.s32.totalorder 2, %s17
      // Predicated region
      $region49: #{tpu_custom_call.1} parent=5 // pred_check
        %p361 = pneg %p360
      $region50: #{tpu_custom_call.1} parent=5 // pred_check_branch
        %363 = sbr.rel (%p361) target = $region52
      $region51: #{tpu_custom_call.1} parent=5 // pred_region
        %s364 = ssub.s32 %s17, 2
        // Predicated region
        $region53: #{tpu_custom_call.1} parent=51 // pred_check
          %p365 = pneg %p114
        $region54: #{tpu_custom_call.1} parent=51 // pred_check_branch
          %367 = sbr.rel (%p365) target = $region56
        $region55: #{tpu_custom_call.1} parent=51 // pred_region
          %s368 = sand.u32 %s99, 1
          %s369 = scalar_lea.sflag [#allocation4], %s368
          %s370 = sand.u32 %s99, 1
          %s371 = smul.addr %s370, 40
          %s372 = scalar_lea.vmem [#allocation7], %s371
          %373 = dma.done %s369, 640
        $region56: #{tpu_custom_call.1} parent=51 // pred_fallthru
          _
      $region52: #{tpu_custom_call.1} parent=5 // pred_fallthru
        _
    $region6: #{tpu_custom_call.1} parent=1 // loop_footer
      %s21 = sadd.s32 1, %s17
    $region7: #{tpu_custom_call.1} parent=1 // loop_footer_branch
      %16 = sbr.rel target = $region3
    $region8: #{tpu_custom_call.1} parent=1 // loop_exit
      _
    %374 = vsyncpa [#allocation3], 1
    %s375 = scalar_lea.sflag [#allocation3], 1
    %376 = vsyncpa %s375, 1
    %377 = vsyncpa [#allocation6], 1
    %s378 = scalar_lea.sflag [#allocation6], 1
    %379 = vsyncpa %s378, 1
    %380 = vsyncpa [#allocation4], 1
    %s381 = scalar_lea.sflag [#allocation4], 1
    %382 = vsyncpa %s381, 1

</llo_original>
